<compile_context>
chip_gen: v7x
topology: tpu7x:2x2x1
jax: 0.10.0
libtpu: 0.0.40
codegen_flags: <defaults>
</compile_context>

<pallas_src>
import functools

import jax
import jax.numpy as jnp
import numpy as np
from jax.experimental import pallas as pl
from jax.experimental.pallas import tpu as pltpu

_LANE = 128  # TPU lane width; feature dims padded to this for unmasked stores


def _round_up(n, m):
    return ((n + m - 1) // m) * m


def _cdiv(a, b):
    return -(-a // b)


def _qnet_kernel(x_ref, w1_ref, b1_ref, w2_ref, b2_ref, w3_ref, b3_ref,
                 state_ref, q_ref):
    """Fused representation MLP + Q-head for one batch tile.

    x: [TB, obs] f32 (cast to bf16 here);  W*: bf16 [in, out] (VMEM resident);
    b*: f32 [1, out];  state: [TB, repr_p] bf16;  q: [TB, act_p] bf16.
    All out dims are padded to multiples of 128 -> lane-dense stores.
    """
    x = x_ref[...].astype(jnp.bfloat16)          # in-kernel cast (free on VPU)

    # ---- representation: Linear + ReLU (bf16 MXU, f32 accumulate) ----
    h1 = jnp.dot(x, w1_ref[...],
                 preferred_element_type=jnp.float32) + b1_ref[...]
    state_bf = jnp.maximum(h1, 0.0).astype(jnp.bfloat16)
    state_ref[...] = state_bf                    # bf16 writeback (half traffic)

    # ---- eval_Qhead: hidden Linear + ReLU ----
    h2 = jnp.dot(state_bf, w2_ref[...],
                 preferred_element_type=jnp.float32) + b2_ref[...]
    h2 = jnp.maximum(h2, 0.0)

    # ---- eval_Qhead: output Linear ----
    q = jnp.dot(h2.astype(jnp.bfloat16), w3_ref[...],
                preferred_element_type=jnp.float32) + b3_ref[...]
    q_ref[...] = q.astype(jnp.bfloat16)


def prepare_params(params):
    """Pad feature dims to lane multiples and cast matmul weights to bf16.

    Run once per parameter update (NOT per forward call): hoists six
    pad/cast HBM passes out of the per-call hot path.
    Zero-padded weight columns/rows are inert: relu(0)=0 and zero rows
    contribute nothing to the next matmul, so padded Q columns are exactly 0
    and are sliced off before argmax.
    """
    w1, b1 = params["w1"], params["b1"]
    w2, b2 = params["w2"], params["b2"]
    w3, b3 = params["w3"], params["b3"]
    repr_dim, q_hidden, act_dim = w1.shape[1], w2.shape[1], w3.shape[1]

    repr_p = _round_up(repr_dim, _LANE)
    qhid_p = _round_up(q_hidden, _LANE)
    act_p = _round_up(act_dim, _LANE)

    prepared = dict(
        w1=jnp.pad(w1, ((0, 0), (0, repr_p - repr_dim))).astype(jnp.bfloat16),
        b1=jnp.pad(b1, ((0, 0), (0, repr_p - repr_dim))),
        w2=jnp.pad(w2, ((0, repr_p - repr_dim),
                        (0, qhid_p - q_hidden))).astype(jnp.bfloat16),
        b2=jnp.pad(b2, ((0, 0), (0, qhid_p - q_hidden))),
        w3=jnp.pad(w3, ((0, qhid_p - q_hidden),
                        (0, act_p - act_dim))).astype(jnp.bfloat16),
        b3=jnp.pad(b3, ((0, 0), (0, act_p - act_dim))),
    )
    dims = dict(repr_dim=repr_dim, act_dim=act_dim)
    return prepared, dims


@functools.partial(jax.jit, static_argnames=("repr_dim", "act_dim", "batch_tile"))
def basic_qnetwork_forward(x, prepared, *, repr_dim, act_dim, batch_tile=512):
    """Fused representation + Q-head Pallas kernel; argmax done in the wrapper.

    Returns (outputs_dict, argmax_action, evalQ) mirroring BasicQnetwork.forward.
    `prepared` must come from prepare_params() (pre-padded, bf16 weights).
    state / evalQ are returned as bf16 (upcast downstream if f32 is required).
    """
    w1, b1 = prepared["w1"], prepared["b1"]
    w2, b2 = prepared["w2"], prepared["b2"]
    w3, b3 = prepared["w3"], prepared["b3"]

    B, obs_dim = x.shape
    repr_p, act_p = w1.shape[1], w3.shape[1]

    # Batch tile selection:
    #  * multiple of 16 (bf16 sublane packing for the outputs),
    #  * capped at batch_tile (default 512: ~85% of HBM roofline per step),
    #  * >= 2 balanced grid steps when B allows, so the "parallel" axis
    #    actually shards across both TensorCores on v7x and the last tile
    #    carries little padding waste.
    tb_cap = max(16, _round_up(batch_tile, 16))
    min_steps = 2 if B >= 32 else 1
    n_steps = max(min_steps, _cdiv(B, tb_cap))
    tb = min(tb_cap, _round_up(_cdiv(B, n_steps), 16))
    grid_steps = _cdiv(B, tb)
    b_pad = grid_steps * tb

    # Only x gets a per-call pad (batch dim, small); it stays f32 in HBM and
    # is cast to bf16 inside the kernel.
    xb = jnp.pad(x, ((0, b_pad - B), (0, 0)))

    # Weights/biases: whole-array blocks with constant index_map -> DMA'd once,
    # kept VMEM-resident across the entire batch grid.
    def _full(a):
        return pl.BlockSpec(a.shape, lambda i: (0, 0))

    state_p, q_p = pl.pallas_call(
        _qnet_kernel,
        out_shape=(
            jax.ShapeDtypeStruct((b_pad, repr_p), jnp.bfloat16),
            jax.ShapeDtypeStruct((b_pad, act_p), jnp.bfloat16),
        ),
        grid=(grid_steps,),
        in_specs=[
            pl.BlockSpec((tb, obs_dim), lambda i: (i, 0)),   # streamed batch tile
            _full(w1), _full(b1),
            _full(w2), _full(b2),
            _full(w3), _full(b3),
        ],
        out_specs=(
            pl.BlockSpec((tb, repr_p), lambda i: (i, 0)),
            pl.BlockSpec((tb, act_p), lambda i: (i, 0)),
        ),
        compiler_params=pltpu.CompilerParams(
            dimension_semantics=("parallel",),               # megacore on v7x
        ),
    )(xb, w1, b1, w2, b2, w3, b3)

    # Slice away batch/feature padding, compute greedy action in the wrapper.
    # (Padded Q columns are exactly 0.0; must slice before argmax.)
    state = state_p[:B, :repr_dim]
    q = q_p[:B, :act_dim]
    # TODO(synk): torch returns int64 for argmax; int32 kept here (fine for indexing).
    argmax_action = jnp.argmax(q, axis=-1).astype(jnp.int32)

    outputs = {"state": state}
    return outputs, argmax_action, q


def init_params(key, obs_dim, repr_dim, q_hidden, action_dim):
    """Deterministic synthetic parameters (shapes follow the module __init__)."""
    ks = jax.random.split(key, 6)

    def lin(kw, kb, fan_in, fan_out):
        bound = 1.0 / np.sqrt(fan_in)
        w = jax.random.uniform(kw, (fan_in, fan_out), jnp.float32, -bound, bound)
        b = jax.random.uniform(kb, (1, fan_out), jnp.float32, -bound, bound)
        return w, b

    w1, b1 = lin(ks[0], ks[1], obs_dim, repr_dim)      # representation MLP
    w2, b2 = lin(ks[2], ks[3], repr_dim, q_hidden)     # Q-head hidden layer
    w3, b3 = lin(ks[4], ks[5], q_hidden, action_dim)   # Q-head output layer
    return dict(w1=w1, b1=b1, w2=w2, b2=b2, w3=w3, b3=b3)


def _reference(x, p):
    """Plain-JAX reference mirroring the kernel's bf16-operand / f32-acc /
    bf16-output math."""
    def d(a, w):
        return jnp.dot(a.astype(jnp.bfloat16), w.astype(jnp.bfloat16),
                       preferred_element_type=jnp.float32)

    state = jnp.maximum(d(x, p["w1"]) + p["b1"], 0.0).astype(jnp.bfloat16)
    h = jnp.maximum(d(state, p["w2"]) + p["b2"], 0.0)
    q = (d(h, p["w3"]) + p["b3"]).astype(jnp.bfloat16)
    return state, jnp.argmax(q, axis=-1).astype(jnp.int32), q


if __name__ == "__main__":
    # Small DQN-like shapes: flat observation, Discrete(6) action space.
    # B=200 deliberately not a multiple of the batch tile (exercises padding
    # and the >=2-grid-step path).
    B, OBS, REPR, QHID, ACT = 200, 32, 128, 128, 6

    key = jax.random.PRNGKey(0)
    k_x, k_p = jax.random.split(key)
    x = jax.random.normal(k_x, (B, OBS), jnp.float32)
    params = init_params(k_p, OBS, REPR, QHID, ACT)

    # One-time parameter preparation (pad + bf16 cast hoisted out of forward).
    prepared, dims = prepare_params(params)

    outputs, argmax_action, evalQ = basic_qnetwork_forward(
        x, prepared, repr_dim=dims["repr_dim"], act_dim=dims["act_dim"])
    jax.block_until_ready((outputs["state"], argmax_action, evalQ))

    # correctness check against plain-JAX reference (same bf16 math path)
    ref_state, ref_amax, ref_q = _reference(x, params)
    assert outputs["state"].shape == (B, REPR)
    assert evalQ.shape == (B, ACT)
    assert argmax_action.shape == (B,)

    got_state = np.asarray(outputs["state"], dtype=np.float32)
    got_q = np.asarray(evalQ, dtype=np.float32)
    assert np.allclose(got_state, np.asarray(ref_state, dtype=np.float32),
                       rtol=2e-2, atol=2e-2)
    assert np.allclose(got_q, np.asarray(ref_q, dtype=np.float32),
                       rtol=2e-2, atol=2e-2)

    # Greedy actions: require equality except where the reference's own top-2
    # Q-values are an effective tie at bf16 precision.
    got_amax = np.asarray(argmax_action)
    ref_amax = np.asarray(ref_amax)
    mism = np.nonzero(got_amax != ref_amax)[0]
    if mism.size:
        diff = np.abs(got_q[mism, got_amax[mism]] - got_q[mism, ref_amax[mism]])
        assert np.all(diff <= 2e-2), "argmax mismatch beyond bf16 tie tolerance"

    print("KERNEL_OK")
</pallas_src>

<mosaic_0001>
module attributes {stable_mosaic.version = 11 : i64} {
  func.func @_qnet_kernel(%arg0: i32, %arg1: memref<112x32xf32, #tpu.memory_space<vmem>>, %arg2: memref<32x128xbf16, #tpu.memory_space<vmem>>, %arg3: memref<1x128xf32, #tpu.memory_space<vmem>>, %arg4: memref<128x128xbf16, #tpu.memory_space<vmem>>, %arg5: memref<1x128xf32, #tpu.memory_space<vmem>>, %arg6: memref<128x128xbf16, #tpu.memory_space<vmem>>, %arg7: memref<1x128xf32, #tpu.memory_space<vmem>>, %arg8: memref<112x128xbf16, #tpu.memory_space<vmem>>, %arg9: memref<112x128xbf16, #tpu.memory_space<vmem>>) attributes {dimension_semantics = [#tpu.dimension_semantics<parallel>], iteration_bounds = array<i64: 2>, scalar_prefetch = 0 : i64, scratch_operands = 0 : i64, tpu.core_type = #tpu.core_type<tc>, window_params = [{transform_indices = @transform_0, window_bounds = array<i64: 112, 32>}, {pipeline_mode = #tpu.pipeline_mode<synchronous>, transform_indices = @transform_1, window_bounds = array<i64: 32, 128>}, {pipeline_mode = #tpu.pipeline_mode<synchronous>, transform_indices = @transform_2, window_bounds = array<i64: 1, 128>}, {pipeline_mode = #tpu.pipeline_mode<synchronous>, transform_indices = @transform_3, window_bounds = array<i64: 128, 128>}, {pipeline_mode = #tpu.pipeline_mode<synchronous>, transform_indices = @transform_4, window_bounds = array<i64: 1, 128>}, {pipeline_mode = #tpu.pipeline_mode<synchronous>, transform_indices = @transform_5, window_bounds = array<i64: 128, 128>}, {pipeline_mode = #tpu.pipeline_mode<synchronous>, transform_indices = @transform_6, window_bounds = array<i64: 1, 128>}, {transform_indices = @transform_7, window_bounds = array<i64: 112, 128>}, {transform_indices = @transform_8, window_bounds = array<i64: 112, 128>}]} {
    %c0 = arith.constant 0 : index
    %c0_0 = arith.constant 0 : index
    %0 = vector.load %arg1[%c0, %c0_0] : memref<112x32xf32, #tpu.memory_space<vmem>>, vector<112x32xf32>
    %1 = arith.truncf %0 : vector<112x32xf32> to vector<112x32xbf16>
    %c0_1 = arith.constant 0 : index
    %c0_2 = arith.constant 0 : index
    %2 = vector.load %arg2[%c0_1, %c0_2] : memref<32x128xbf16, #tpu.memory_space<vmem>>, vector<32x128xbf16>
    %cst = arith.constant dense<0.000000e+00> : vector<112x128xf32>
    %3 = tpu.matmul %1, %2, %cst {dimension_numbers = #tpu.dot_dimension_numbers<[1], [0], [0], [1], [0, 0, 1, 1], [], []>} : vector<112x32xbf16>, vector<32x128xbf16>, vector<112x128xf32> -> vector<112x128xf32>
    %c0_3 = arith.constant 0 : index
    %c0_4 = arith.constant 0 : index
    %4 = vector.load %arg3[%c0_3, %c0_4] : memref<1x128xf32, #tpu.memory_space<vmem>>, vector<1x128xf32>
    %5 = vector.broadcast %4 : vector<1x128xf32> to vector<112x128xf32>
    %6 = arith.addf %3, %5 : vector<112x128xf32>
    %cst_5 = arith.constant 0.000000e+00 : f32
    %7 = vector.broadcast %cst_5 : f32 to vector<112x128xf32>
    %8 = arith.maximumf %6, %7 : vector<112x128xf32>
    %9 = arith.truncf %8 : vector<112x128xf32> to vector<112x128xbf16>
    %c0_6 = arith.constant 0 : index
    %c0_7 = arith.constant 0 : index
    %10 = vector.load %arg8[%c0_6, %c0_7] : memref<112x128xbf16, #tpu.memory_space<vmem>>, vector<112x128xbf16>
    tpu.vector_store %arg8[%c0_6, %c0_7], %9 {strides = array<i32>} : memref<112x128xbf16, #tpu.memory_space<vmem>>, vector<112x128xbf16>,
    %c0_8 = arith.constant 0 : index
    %c0_9 = arith.constant 0 : index
    %11 = vector.load %arg4[%c0_8, %c0_9] : memref<128x128xbf16, #tpu.memory_space<vmem>>, vector<128x128xbf16>
    %cst_10 = arith.constant dense<0.000000e+00> : vector<112x128xf32>
    %12 = tpu.matmul %9, %11, %cst_10 {dimension_numbers = #tpu.dot_dimension_numbers<[1], [0], [0], [1], [0, 0, 1, 1], [], []>} : vector<112x128xbf16>, vector<128x128xbf16>, vector<112x128xf32> -> vector<112x128xf32>
    %c0_11 = arith.constant 0 : index
    %c0_12 = arith.constant 0 : index
    %13 = vector.load %arg5[%c0_11, %c0_12] : memref<1x128xf32, #tpu.memory_space<vmem>>, vector<1x128xf32>
    %14 = vector.broadcast %13 : vector<1x128xf32> to vector<112x128xf32>
    %15 = arith.addf %12, %14 : vector<112x128xf32>
    %cst_13 = arith.constant 0.000000e+00 : f32
    %16 = vector.broadcast %cst_13 : f32 to vector<112x128xf32>
    %17 = arith.maximumf %15, %16 : vector<112x128xf32>
    %18 = arith.truncf %17 : vector<112x128xf32> to vector<112x128xbf16>
    %c0_14 = arith.constant 0 : index
    %c0_15 = arith.constant 0 : index
    %19 = vector.load %arg6[%c0_14, %c0_15] : memref<128x128xbf16, #tpu.memory_space<vmem>>, vector<128x128xbf16>
    %cst_16 = arith.constant dense<0.000000e+00> : vector<112x128xf32>
    %20 = tpu.matmul %18, %19, %cst_16 {dimension_numbers = #tpu.dot_dimension_numbers<[1], [0], [0], [1], [0, 0, 1, 1], [], []>} : vector<112x128xbf16>, vector<128x128xbf16>, vector<112x128xf32> -> vector<112x128xf32>
    %c0_17 = arith.constant 0 : index
    %c0_18 = arith.constant 0 : index
    %21 = vector.load %arg7[%c0_17, %c0_18] : memref<1x128xf32, #tpu.memory_space<vmem>>, vector<1x128xf32>
    %22 = vector.broadcast %21 : vector<1x128xf32> to vector<112x128xf32>
    %23 = arith.addf %20, %22 : vector<112x128xf32>
    %24 = arith.truncf %23 : vector<112x128xf32> to vector<112x128xbf16>
    %c0_19 = arith.constant 0 : index
    %c0_20 = arith.constant 0 : index
    %25 = vector.load %arg9[%c0_19, %c0_20] : memref<112x128xbf16, #tpu.memory_space<vmem>>, vector<112x128xbf16>
    tpu.vector_store %arg9[%c0_19, %c0_20], %24 {strides = array<i32>} : memref<112x128xbf16, #tpu.memory_space<vmem>>, vector<112x128xbf16>,
    return
  }
  func.func @transform_0(%arg0: i32) -> (i32, i32) {
    %c0_i32 = arith.constant 0 : i32
    %c0_i32_0 = arith.constant 0 : i32
    return %arg0, %c0_i32 : i32, i32
  }
  func.func @transform_1(%arg0: i32) -> (i32, i32) {
    %c0_i32 = arith.constant 0 : i32
    %c0_i32_0 = arith.constant 0 : i32
    %c0_i32_1 = arith.constant 0 : i32
    return %c0_i32, %c0_i32_0 : i32, i32
  }
  func.func @transform_2(%arg0: i32) -> (i32, i32) {
    %c0_i32 = arith.constant 0 : i32
    %c0_i32_0 = arith.constant 0 : i32
    %c0_i32_1 = arith.constant 0 : i32
    return %c0_i32, %c0_i32_0 : i32, i32
  }
  func.func @transform_3(%arg0: i32) -> (i32, i32) {
    %c0_i32 = arith.constant 0 : i32
    %c0_i32_0 = arith.constant 0 : i32
    %c0_i32_1 = arith.constant 0 : i32
    return %c0_i32, %c0_i32_0 : i32, i32
  }
  func.func @transform_4(%arg0: i32) -> (i32, i32) {
    %c0_i32 = arith.constant 0 : i32
    %c0_i32_0 = arith.constant 0 : i32
    %c0_i32_1 = arith.constant 0 : i32
    return %c0_i32, %c0_i32_0 : i32, i32
  }
  func.func @transform_5(%arg0: i32) -> (i32, i32) {
    %c0_i32 = arith.constant 0 : i32
    %c0_i32_0 = arith.constant 0 : i32
    %c0_i32_1 = arith.constant 0 : i32
    return %c0_i32, %c0_i32_0 : i32, i32
  }
  func.func @transform_6(%arg0: i32) -> (i32, i32) {
    %c0_i32 = arith.constant 0 : i32
    %c0_i32_0 = arith.constant 0 : i32
    %c0_i32_1 = arith.constant 0 : i32
    return %c0_i32, %c0_i32_0 : i32, i32
  }
  func.func @transform_7(%arg0: i32) -> (i32, i32) {
    %c0_i32 = arith.constant 0 : i32
    %c0_i32_0 = arith.constant 0 : i32
    return %arg0, %c0_i32 : i32, i32
  }
  func.func @transform_8(%arg0: i32) -> (i32, i32) {
    %c0_i32 = arith.constant 0 : i32
    %c0_i32_0 = arith.constant 0 : i32
    return %arg0, %c0_i32 : i32, i32
  }
}

</mosaic_0001>

<llo_original>
// kernel: basic_qnetwork_forward.1
$region0: #{basic_qnetwork_forward.1}
  #allocation0 [shape = 'u32[]', space=smem, size = 0x4, offset = 0x4, fixed_abs, tag = 'smem constant byte address 0x4 - core index']
  #allocation1 [shape = 'u32[144,128]{1,0:T(1,128)}', space=vmem, size = 0x12000, scoped, tag = 'internal scratch']
  %s0 = inlined_call_operand.vmem [shape: f32[224,32], index: 0, kind: input, shape index: {}]
  %s1 = inlined_call_operand.vmem [shape: bf16[32,128], index: 1, kind: input, shape index: {}]
  %s2 = inlined_call_operand.vmem [shape: f32[1,128], index: 2, kind: input, shape index: {}]
  %s3 = inlined_call_operand.vmem [shape: bf16[128,128], index: 3, kind: input, shape index: {}]
  %s4 = inlined_call_operand.vmem [shape: f32[1,128], index: 4, kind: input, shape index: {}]
  %s5 = inlined_call_operand.vmem [shape: bf16[128,128], index: 5, kind: input, shape index: {}]
  %s6 = inlined_call_operand.vmem [shape: f32[1,128], index: 6, kind: input, shape index: {}]
  %s7 = inlined_call_operand.vmem [shape: bf16[224,128], index: 7, kind: output, shape index: {0}]
  %s8 = inlined_call_operand.vmem [shape: bf16[224,128], index: 8, kind: output, shape index: {1}]
  %9 = xla_tuple %s7, %s8
  %s10 = sld [smem:[#allocation0]]
  $region69: #{basic_qnetwork_forward.1} parent=0
    _
  %s12 = ssub.s32 1, %s10
  %s13 = scalar_select 0, %s12, %s10
  loop: start=0, step=1, limit=4
  $region2: #{basic_qnetwork_forward.1} parent=0 // loop_pre_header
    _
  $region3: #{basic_qnetwork_forward.1} parent=0 // loop_header
    %s15 = sphi 0, %s19
    %p16 = scmp.ge.s32.totalorder %s15, 4
    %s25 = sphi 0, %s27
    %s28 = sphi 0, %s25
    %s29 = sphi 0, %s28
    %s45 = sphi 0, %s29
    %s49 = sphi 0, %s49
    %s51 = sphi 0, %s49
    %s52 = sphi 0, %s51
    %s66 = sphi 0, %s52
    %s70 = sphi 0, %s70
    %s72 = sphi 0, %s70
    %s73 = sphi 0, %s72
    %s87 = sphi 0, %s73
    %s91 = sphi 0, %s91
    %s93 = sphi 0, %s91
    %s94 = sphi 0, %s93
    %s108 = sphi 0, %s94
    %s112 = sphi 0, %s112
    %s114 = sphi 0, %s112
    %s115 = sphi 0, %s114
    %s129 = sphi 0, %s115
    %s133 = sphi 0, %s133
    %s135 = sphi 0, %s133
    %s136 = sphi 0, %s135
    %s150 = sphi 0, %s136
    %s154 = sphi 0, %s154
    %s156 = sphi 0, %s154
    %s157 = sphi 0, %s156
    %s171 = sphi 0, %s157
    %s177 = sphi 0, %s179
    %s180 = sphi 0, %s177
    %s181 = sphi 0, %s180
    %s197 = sphi 0, %s181
    %s203 = sphi 0, %s205
    %s206 = sphi 0, %s203
    %s207 = sphi 0, %s206
    %s223 = sphi 0, %s207
  $region4: #{basic_qnetwork_forward.1} parent=0 // loop_header_branch
    %18 = sbr.rel (%p16) target = $region8
  $region5: #{basic_qnetwork_forward.1} parent=0 // loop_body
    %s20 = ssub.s32 %s15, 1
    %s21 = ssub.s32 %s15, 2
    %s22 = sadd.s32 %s15, 1
    %s23 = ssub.s32 %s15, %s22
    %p24 = scmp.eq.s32.totalorder %s23, 0
    %s26 = sadd.s32 %s25, 1
    %s27 = scalar_select %p24, %s25, %s26
    %p30 = pneg %p24
    %p31 = scmp.eq.s32.totalorder %s15, 1
    %p32 = por %p30, %p31
    %p33 = scmp.ne.s32.totalorder %s25, %s28
    %p34 = scmp.eq.s32.totalorder %s15, 0
    %p35 = por %p33, %p34
    %p36 = scmp.ne.s32.totalorder %s25, %s28
    %p37 = scmp.eq.s32.totalorder %s20, 1
    %p38 = por %p36, %p37
    %p39 = scmp.ne.s32.totalorder %s28, %s29
    %p40 = scmp.eq.s32.totalorder %s20, 0
    %p41 = por %p39, %p40
    %p42 = scmp.ne.s32.totalorder %s28, %s29
    %p43 = scmp.eq.s32.totalorder %s21, 1
    %p44 = por %p42, %p43
    %p46 = scmp.ne.s32.totalorder %s29, %s45
    %p47 = scmp.eq.s32.totalorder %s21, 0
    %p48 = por %p46, %p47
    %s50 = sadd.s32 %s49, 1
    %p53 = scmp.eq.s32.totalorder %s15, 1
    %p54 = scmp.ne.s32.totalorder %s49, %s51
    %p55 = scmp.eq.s32.totalorder %s15, 0
    %p56 = por %p54, %p55
    %p57 = scmp.ne.s32.totalorder %s49, %s51
    %p58 = scmp.eq.s32.totalorder %s20, 1
    %p59 = por %p57, %p58
    %p60 = scmp.ne.s32.totalorder %s51, %s52
    %p61 = scmp.eq.s32.totalorder %s20, 0
    %p62 = por %p60, %p61
    %p63 = scmp.ne.s32.totalorder %s51, %s52
    %p64 = scmp.eq.s32.totalorder %s21, 1
    %p65 = por %p63, %p64
    %p67 = scmp.ne.s32.totalorder %s52, %s66
    %p68 = scmp.eq.s32.totalorder %s21, 0
    %p69 = por %p67, %p68
    %s71 = sadd.s32 %s70, 1
    %p74 = scmp.eq.s32.totalorder %s15, 1
    %p75 = scmp.ne.s32.totalorder %s70, %s72
    %p76 = scmp.eq.s32.totalorder %s15, 0
    %p77 = por %p75, %p76
    %p78 = scmp.ne.s32.totalorder %s70, %s72
    %p79 = scmp.eq.s32.totalorder %s20, 1
    %p80 = por %p78, %p79
    %p81 = scmp.ne.s32.totalorder %s72, %s73
    %p82 = scmp.eq.s32.totalorder %s20, 0
    %p83 = por %p81, %p82
    %p84 = scmp.ne.s32.totalorder %s72, %s73
    %p85 = scmp.eq.s32.totalorder %s21, 1
    %p86 = por %p84, %p85
    %p88 = scmp.ne.s32.totalorder %s73, %s87
    %p89 = scmp.eq.s32.totalorder %s21, 0
    %p90 = por %p88, %p89
    %s92 = sadd.s32 %s91, 1
    %p95 = scmp.eq.s32.totalorder %s15, 1
    %p96 = scmp.ne.s32.totalorder %s91, %s93
    %p97 = scmp.eq.s32.totalorder %s15, 0
    %p98 = por %p96, %p97
    %p99 = scmp.ne.s32.totalorder %s91, %s93
    %p100 = scmp.eq.s32.totalorder %s20, 1
    %p101 = por %p99, %p100
    %p102 = scmp.ne.s32.totalorder %s93, %s94
    %p103 = scmp.eq.s32.totalorder %s20, 0
    %p104 = por %p102, %p103
    %p105 = scmp.ne.s32.totalorder %s93, %s94
    %p106 = scmp.eq.s32.totalorder %s21, 1
    %p107 = por %p105, %p106
    %p109 = scmp.ne.s32.totalorder %s94, %s108
    %p110 = scmp.eq.s32.totalorder %s21, 0
    %p111 = por %p109, %p110
    %s113 = sadd.s32 %s112, 1
    %p116 = scmp.eq.s32.totalorder %s15, 1
    %p117 = scmp.ne.s32.totalorder %s112, %s114
    %p118 = scmp.eq.s32.totalorder %s15, 0
    %p119 = por %p117, %p118
    %p120 = scmp.ne.s32.totalorder %s112, %s114
    %p121 = scmp.eq.s32.totalorder %s20, 1
    %p122 = por %p120, %p121
    %p123 = scmp.ne.s32.totalorder %s114, %s115
    %p124 = scmp.eq.s32.totalorder %s20, 0
    %p125 = por %p123, %p124
    %p126 = scmp.ne.s32.totalorder %s114, %s115
    %p127 = scmp.eq.s32.totalorder %s21, 1
    %p128 = por %p126, %p127
    %p130 = scmp.ne.s32.totalorder %s115, %s129
    %p131 = scmp.eq.s32.totalorder %s21, 0
    %p132 = por %p130, %p131
    %s134 = sadd.s32 %s133, 1
    %p137 = scmp.eq.s32.totalorder %s15, 1
    %p138 = scmp.ne.s32.totalorder %s133, %s135
    %p139 = scmp.eq.s32.totalorder %s15, 0
    %p140 = por %p138, %p139
    %p141 = scmp.ne.s32.totalorder %s133, %s135
    %p142 = scmp.eq.s32.totalorder %s20, 1
    %p143 = por %p141, %p142
    %p144 = scmp.ne.s32.totalorder %s135, %s136
    %p145 = scmp.eq.s32.totalorder %s20, 0
    %p146 = por %p144, %p145
    %p147 = scmp.ne.s32.totalorder %s135, %s136
    %p148 = scmp.eq.s32.totalorder %s21, 1
    %p149 = por %p147, %p148
    %p151 = scmp.ne.s32.totalorder %s136, %s150
    %p152 = scmp.eq.s32.totalorder %s21, 0
    %p153 = por %p151, %p152
    %s155 = sadd.s32 %s154, 1
    %p158 = scmp.eq.s32.totalorder %s15, 1
    %p159 = scmp.ne.s32.totalorder %s154, %s156
    %p160 = scmp.eq.s32.totalorder %s15, 0
    %p161 = por %p159, %p160
    %p162 = scmp.ne.s32.totalorder %s154, %s156
    %p163 = scmp.eq.s32.totalorder %s20, 1
    %p164 = por %p162, %p163
    %p165 = scmp.ne.s32.totalorder %s156, %s157
    %p166 = scmp.eq.s32.totalorder %s20, 0
    %p167 = por %p165, %p166
    %p168 = scmp.ne.s32.totalorder %s156, %s157
    %p169 = scmp.eq.s32.totalorder %s21, 1
    %p170 = por %p168, %p169
    %p172 = scmp.ne.s32.totalorder %s157, %s171
    %p173 = scmp.eq.s32.totalorder %s21, 0
    %p174 = por %p172, %p173
    %s175 = ssub.s32 %s15, %s22
    %p176 = scmp.eq.s32.totalorder %s175, 0
    %s178 = sadd.s32 %s177, 1
    %s179 = scalar_select %p176, %s177, %s178
    %p182 = pneg %p176
    %p183 = scmp.eq.s32.totalorder %s15, 1
    %p184 = por %p182, %p183
    %p185 = scmp.ne.s32.totalorder %s177, %s180
    %p186 = scmp.eq.s32.totalorder %s15, 0
    %p187 = por %p185, %p186
    %p188 = scmp.ne.s32.totalorder %s177, %s180
    %p189 = scmp.eq.s32.totalorder %s20, 1
    %p190 = por %p188, %p189
    %p191 = scmp.ne.s32.totalorder %s180, %s181
    %p192 = scmp.eq.s32.totalorder %s20, 0
    %p193 = por %p191, %p192
    %p194 = scmp.ne.s32.totalorder %s180, %s181
    %p195 = scmp.eq.s32.totalorder %s21, 1
    %p196 = por %p194, %p195
    %p198 = scmp.ne.s32.totalorder %s181, %s197
    %p199 = scmp.eq.s32.totalorder %s21, 0
    %p200 = por %p198, %p199
    %s201 = ssub.s32 %s15, %s22
    %p202 = scmp.eq.s32.totalorder %s201, 0
    %s204 = sadd.s32 %s203, 1
    %s205 = scalar_select %p202, %s203, %s204
    %p208 = pneg %p202
    %p209 = scmp.eq.s32.totalorder %s15, 1
    %p210 = por %p208, %p209
    %p211 = scmp.ne.s32.totalorder %s203, %s206
    %p212 = scmp.eq.s32.totalorder %s15, 0
    %p213 = por %p211, %p212
    %p214 = scmp.ne.s32.totalorder %s203, %s206
    %p215 = scmp.eq.s32.totalorder %s20, 1
    %p216 = por %p214, %p215
    %p217 = scmp.ne.s32.totalorder %s206, %s207
    %p218 = scmp.eq.s32.totalorder %s20, 0
    %p219 = por %p217, %p218
    %p220 = scmp.ne.s32.totalorder %s206, %s207
    %p221 = scmp.eq.s32.totalorder %s21, 1
    %p222 = por %p220, %p221
    %p224 = scmp.ne.s32.totalorder %s207, %s223
    %p225 = scmp.eq.s32.totalorder %s21, 0
    %p226 = por %p224, %p225
    %p227 = scmp.le.s32.totalorder 1, %s15
    %p228 = scmp.lt.s32.totalorder %s15, 3
    %p229 = pnand %p227, %p228
    %p230 = pneg %p229
    // Predicated region
    $region9: #{basic_qnetwork_forward.1} parent=5 // pred_check
      _
    $region10: #{basic_qnetwork_forward.1} parent=5 // pred_check_branch
      %232 = sbr.rel (%p229) target = $region12
    $region11: #{basic_qnetwork_forward.1} parent=5 // pred_region
      %s233 = ssub.s32 %s15, 1
      // Predicated region
      $region13: #{basic_qnetwork_forward.1} parent=11 // pred_check
        %p234 = pneg %p62
      $region14: #{basic_qnetwork_forward.1} parent=11 // pred_check_branch
        %236 = sbr.rel (%p234) target = $region16
      $region15: #{basic_qnetwork_forward.1} parent=11 // pred_region
        _
      $region16: #{basic_qnetwork_forward.1} parent=11 // pred_fallthru
        _
      // Predicated region
      $region17: #{basic_qnetwork_forward.1} parent=11 // pred_check
        %p237 = pneg %p83
      $region18: #{basic_qnetwork_forward.1} parent=11 // pred_check_branch
        %239 = sbr.rel (%p237) target = $region20
      $region19: #{basic_qnetwork_forward.1} parent=11 // pred_region
        _
      $region20: #{basic_qnetwork_forward.1} parent=11 // pred_fallthru
        _
      // Predicated region
      $region21: #{basic_qnetwork_forward.1} parent=11 // pred_check
        %p240 = pneg %p104
      $region22: #{basic_qnetwork_forward.1} parent=11 // pred_check_branch
        %242 = sbr.rel (%p240) target = $region24
      $region23: #{basic_qnetwork_forward.1} parent=11 // pred_region
        _
      $region24: #{basic_qnetwork_forward.1} parent=11 // pred_fallthru
        _
      // Predicated region
      $region25: #{basic_qnetwork_forward.1} parent=11 // pred_check
        %p243 = pneg %p125
      $region26: #{basic_qnetwork_forward.1} parent=11 // pred_check_branch
        %245 = sbr.rel (%p243) target = $region28
      $region27: #{basic_qnetwork_forward.1} parent=11 // pred_region
        _
      $region28: #{basic_qnetwork_forward.1} parent=11 // pred_fallthru
        _
      // Predicated region
      $region29: #{basic_qnetwork_forward.1} parent=11 // pred_check
        %p246 = pneg %p146
      $region30: #{basic_qnetwork_forward.1} parent=11 // pred_check_branch
        %248 = sbr.rel (%p246) target = $region32
      $region31: #{basic_qnetwork_forward.1} parent=11 // pred_region
        _
      $region32: #{basic_qnetwork_forward.1} parent=11 // pred_fallthru
        _
      // Predicated region
      $region33: #{basic_qnetwork_forward.1} parent=11 // pred_check
        %p249 = pneg %p167
      $region34: #{basic_qnetwork_forward.1} parent=11 // pred_check_branch
        %251 = sbr.rel (%p249) target = $region36
      $region35: #{basic_qnetwork_forward.1} parent=11 // pred_region
        _
      $region36: #{basic_qnetwork_forward.1} parent=11 // pred_fallthru
        _
    $region12: #{basic_qnetwork_forward.1} parent=5 // pred_fallthru
      _
    %p252 = scmp.lt.s32.totalorder %s15, 2
    // Predicated region
    $region37: #{basic_qnetwork_forward.1} parent=5 // pred_check
      %p253 = pneg %p252
    $region38: #{basic_qnetwork_forward.1} parent=5 // pred_check_branch
      %255 = sbr.rel (%p253) target = $region40
    $region39: #{basic_qnetwork_forward.1} parent=5 // pred_region
      // Predicated region
      $region41: #{basic_qnetwork_forward.1} parent=39 // pred_check
        %p256 = pneg %p35
      $region42: #{basic_qnetwork_forward.1} parent=39 // pred_check_branch
        %258 = sbr.rel (%p256) target = $region44
      $region43: #{basic_qnetwork_forward.1} parent=39 // pred_region
        %s259 = smul.u32 14, %s15
        %p260 = scmp.lt.s32.totalorder %s259, 27
        %s261 = scalar_select %p260, %s259, 27
        %s262 = smul.addr %s261, 8
        %s263 = scalar_lea.vmem %s0, %s262
        %s264 = smul.u32 14, %s15
      $region44: #{basic_qnetwork_forward.1} parent=39 // pred_fallthru
        _
    $region40: #{basic_qnetwork_forward.1} parent=5 // pred_fallthru
      _
    %p265 = scmp.le.s32.totalorder 1, %s15
    %p266 = scmp.lt.s32.totalorder %s15, 3
    %p267 = pnand %p265, %p266
    %p268 = pneg %p267
    // Predicated region
    $region45: #{basic_qnetwork_forward.1} parent=5 // pred_check
      _
    $region46: #{basic_qnetwork_forward.1} parent=5 // pred_check_branch
      %270 = sbr.rel (%p267) target = $region48
    $region47: #{basic_qnetwork_forward.1} parent=5 // pred_region
      %s271 = ssub.s32 %s15, 1
      %s272 = smul.u32 14, %s20
      %p273 = scmp.lt.s32.totalorder %s272, 27
      %s274 = scalar_select %p273, %s272, 27
      %s275 = smul.addr %s274, 8
      %s276 = scalar_lea.vmem %s0, %s275
      %p277 = pneg %p41
      %p278 = pneg %p38
      %p279 = pneg %p62
      %p280 = pneg %p59
      %p281 = pneg %p83
      %p282 = pneg %p80
      %p283 = pneg %p104
      %p284 = pneg %p101
      %p285 = pneg %p125
      %p286 = pneg %p122
      %p287 = pneg %p146
      %p288 = pneg %p143
      %p289 = pneg %p167
      %p290 = pneg %p164
      %p291 = pneg %p193
      %p292 = pneg %p190
      %s293 = smul.u32 14, %s20
      %p294 = scmp.lt.s32.totalorder %s293, 27
      %s295 = scalar_select %p294, %s293, 27
      %s296 = smul.addr %s295, 4
      %s297 = scalar_lea.vmem %s7, %s296
      %p298 = pneg %p219
      %p299 = pneg %p216
      %s300 = smul.u32 14, %s20
      %p301 = scmp.lt.s32.totalorder %s300, 27
      %s302 = scalar_select %p301, %s300, 27
      %s303 = smul.addr %s302, 4
      %s304 = scalar_lea.vmem %s8, %s303
      %s305 = smul.u32 14, %s20
      %p306 = scmp.lt.s32.totalorder %s305, 27
      %s307 = scalar_select %p306, %s305, 27
      %s308 = smul.addr %s307, 8
      %s309 = scalar_lea.vmem %s0, %s308
      %s310 = smul.u32 14, %s20
      %s311 = smul.u32 14, %s20
      %p312 = scmp.lt.s32.totalorder %s311, 27
      %s313 = scalar_select %p312, %s311, 27
      %s314 = smul.addr %s313, 4
      %s315 = scalar_lea.vmem %s7, %s314
      %s316 = smul.u32 14, %s20
      %s317 = smul.u32 14, %s20
      %p318 = scmp.lt.s32.totalorder %s317, 27
      %s319 = scalar_select %p318, %s317, 27
      %s320 = smul.addr %s319, 4
      %s321 = scalar_lea.vmem %s8, %s320
      %s322 = smul.u32 14, %s20
      %v324 = vld [vmem:[%s309] sm:$0xff]
      %v325 = vld [vmem:[%s309 + $0x8] sm:$0xff]
      %v326 = vld [vmem:[%s309 + $0x10] sm:$0xff]
      %v327 = vld [vmem:[%s309 + $0x18] sm:$0xff]
      %v328 = vld [vmem:[%s309 + $0x20] sm:$0xff]
      %v329 = vld [vmem:[%s309 + $0x28] sm:$0xff]
      %v330 = vld [vmem:[%s309 + $0x30] sm:$0xff]
      %v331 = vld [vmem:[%s309 + $0x38] sm:$0xff]
      %v332 = vld [vmem:[%s309 + $0x40] sm:$0xff]
      %v333 = vld [vmem:[%s309 + $0x48] sm:$0xff]
      %v334 = vld [vmem:[%s309 + $0x50] sm:$0xff]
      %v335 = vld [vmem:[%s309 + $0x58] sm:$0xff]
      %v336 = vld [vmem:[%s309 + $0x60] sm:$0xff]
      %v337 = vld [vmem:[%s309 + $0x68] sm:$0xff]
      %v338 = vpack.c.bf16 %v325, %v324
      %v339 = vpack.c.bf16 %v327, %v326
      %v340 = vpack.c.bf16 %v329, %v328
      %v341 = vpack.c.bf16 %v331, %v330
      %v342 = vpack.c.bf16 %v333, %v332
      %v343 = vpack.c.bf16 %v335, %v334
      %v344 = vpack.c.bf16 %v337, %v336
      %v345 = vld [vmem:[%s1] sm:$0xf]
      %v346 = vld [vmem:[%s1 + $0x4] sm:$0xf]
      %v347 = vld [vmem:[%s1 + $0x8] sm:$0xf]
      %v348 = vld [vmem:[%s1 + $0xc] sm:$0xf]
      %v349 = vld [vmem:[%s2] sm:$0x1]
      %v351 = vlaneseq
      %v352 = vshrl.u32 %v351, 7
      %v353 = vsub.s32 0, %v352
      %v354 = vrot.slane %v349, %v353
      %v360 = vunpack.c.l.b16 %v345
      %v361 = vunpack.c.l.b16 %v346
      %v362 = vunpack.c.l.b16 %v347
      %v363 = vunpack.c.l.b16 %v348
      %v364 = vpack.c.b16 %v361, %v360
      %v365 = vpack.c.b16 %v363, %v362
      %vm368 = vcmask 261120
      %v370 = vsel %vm368, %v338, 0
      %v373 = vsel %vm368, %v339, 0
      %v376 = vsel %vm368, %v340, 0
      %v379 = vsel %vm368, %v341, 0
      %v382 = vsel %vm368, %v342, 0
      %v385 = vsel %vm368, %v343, 0
      %v388 = vsel %vm368, %v344, 0
      %390 = vmatprep.subr.bf16.mxu0 0
      %391 = vmatpush1.bf16.msra.mxu0 %v364
      %392 = vmatprep.subr.bf16.mxu0 0
      %393 = vmatpush1.bf16.msra.mxu0 %v365
      %394 = vmatprep.subr.bf16.mxu0 0
      %395 = vmatpush1.bf16.msra.mxu0 0
      %396 = vmatprep.subr.bf16.mxu0 0
      %397 = vmatpush1.bf16.msra.mxu0 0
      %398 = vmatprep.subr.bf16.mxu0 0
      %399 = vmatpush1.bf16.msra.mxu0 0
      %400 = vmatprep.subr.bf16.mxu0 0
      %401 = vmatpush1.bf16.msra.mxu0 0
      %402 = vmatprep.subr.bf16.mxu0 0
      %403 = vmatpush1.bf16.msra.mxu0 0
      %404 = vmatprep.subr.bf16.mxu0 0
      %405 = vmatpush1.bf16.msra.mxu0 0
      %406 = vmatprep.subr.bf16.mxu0 0
      %407 = vmatpush1.bf16.msra.mxu0 0
      %408 = vmatprep.subr.bf16.mxu0 0
      %409 = vmatpush1.bf16.msra.mxu0 0
      %410 = vmatprep.subr.bf16.mxu0 0
      %411 = vmatpush1.bf16.msra.mxu0 0
      %412 = vmatprep.subr.bf16.mxu0 0
      %413 = vmatpush1.bf16.msra.mxu0 0
      %414 = vmatprep.subr.bf16.mxu0 0
      %415 = vmatpush1.bf16.msra.mxu0 0
      %416 = vmatprep.subr.bf16.mxu0 0
      %417 = vmatpush1.bf16.msra.mxu0 0
      %418 = vmatprep.subr.bf16.mxu0 0
      %419 = vmatpush1.bf16.msra.mxu0 0
      %420 = vmatprep.subr.bf16.mxu0 0
      %421 = vmatpush1.bf16.msra.mxu0 0
      %422 = vmatprep.mubr.bf16.mxu0 0
      %423 = vmatmul.mubr.bf16.gmra.mrb[0].mxu0 %v370
      %v424 = vpop.f32.mrb[0].mxu0
      %v425 = vadd.f32 %v354, %v424
      %v426 = vpop.f32.mrb[0].mxu0
      %v427 = vpop.f32.mrb[0].mxu0
      %v428 = vadd.f32 %v354, %v427
      %v429 = vpop.f32.mrb[0].mxu0
      %430 = vmatprep.mubr.bf16.mxu0 0
      %431 = vmatmul.mubr.bf16.gmra.mrb[0].mxu0 %v373
      %v432 = vpop.f32.mrb[0].mxu0
      %v433 = vadd.f32 %v354, %v432
      %v434 = vpop.f32.mrb[0].mxu0
      %v435 = vpop.f32.mrb[0].mxu0
      %v436 = vadd.f32 %v354, %v435
      %v437 = vpop.f32.mrb[0].mxu0
      %438 = vmatprep.mubr.bf16.mxu0 0
      %439 = vmatmul.mubr.bf16.gmra.mrb[0].mxu0 %v376
      %v440 = vpop.f32.mrb[0].mxu0
      %v441 = vadd.f32 %v354, %v440
      %v442 = vpop.f32.mrb[0].mxu0
      %v443 = vpop.f32.mrb[0].mxu0
      %v444 = vadd.f32 %v354, %v443
      %v445 = vpop.f32.mrb[0].mxu0
      %446 = vmatprep.mubr.bf16.mxu0 0
      %447 = vmatmul.mubr.bf16.gmra.mrb[0].mxu0 %v379
      %v448 = vpop.f32.mrb[0].mxu0
      %v449 = vadd.f32 %v354, %v448
      %v450 = vpop.f32.mrb[0].mxu0
      %v451 = vpop.f32.mrb[0].mxu0
      %v452 = vadd.f32 %v354, %v451
      %v453 = vpop.f32.mrb[0].mxu0
      %454 = vmatprep.mubr.bf16.mxu0 0
      %455 = vmatmul.mubr.bf16.gmra.mrb[0].mxu0 %v382
      %v456 = vpop.f32.mrb[0].mxu0
      %v457 = vadd.f32 %v354, %v456
      %v458 = vpop.f32.mrb[0].mxu0
      %v459 = vpop.f32.mrb[0].mxu0
      %v460 = vadd.f32 %v354, %v459
      %v461 = vpop.f32.mrb[0].mxu0
      %462 = vmatprep.mubr.bf16.mxu0 0
      %463 = vmatmul.mubr.bf16.gmra.mrb[0].mxu0 %v385
      %v464 = vpop.f32.mrb[0].mxu0
      %v465 = vadd.f32 %v354, %v464
      %v466 = vpop.f32.mrb[0].mxu0
      %v467 = vpop.f32.mrb[0].mxu0
      %v468 = vadd.f32 %v354, %v467
      %v469 = vpop.f32.mrb[0].mxu0
      %470 = vmatprep.mubr.bf16.mxu0 0
      %471 = vmatmul.mubr.bf16.gmra.mrb[0].mxu0 %v388
      %v472 = vpop.f32.mrb[0].mxu0
      %v473 = vadd.f32 %v354, %v472
      %v474 = vpop.f32.mrb[0].mxu0
      %v475 = vpop.f32.mrb[0].mxu0
      %v476 = vadd.f32 %v354, %v475
      %v477 = vpop.f32.mrb[0].mxu0
      %478 = vdwg.mxu0
      %v479 = vmax.f32 %v425, 0.0
      %v480 = vmax.f32 %v428, 0.0
      %v481 = vmax.f32 %v433, 0.0
      %v482 = vmax.f32 %v436, 0.0
      %v483 = vmax.f32 %v441, 0.0
      %v484 = vmax.f32 %v444, 0.0
      %v485 = vmax.f32 %v449, 0.0
      %v486 = vmax.f32 %v452, 0.0
      %v487 = vmax.f32 %v457, 0.0
      %v488 = vmax.f32 %v460, 0.0
      %v489 = vmax.f32 %v465, 0.0
      %v490 = vmax.f32 %v468, 0.0
      %v491 = vmax.f32 %v473, 0.0
      %v492 = vmax.f32 %v476, 0.0
      %v493 = vpack.c.bf16 %v480, %v479
      %v494 = vpack.c.bf16 %v482, %v481
      %v495 = vpack.c.bf16 %v484, %v483
      %v496 = vpack.c.bf16 %v486, %v485
      %v497 = vpack.c.bf16 %v488, %v487
      %v498 = vpack.c.bf16 %v490, %v489
      %v499 = vpack.c.bf16 %v492, %v491
      %v507 = vunpack.c.l.b16 %v493
      %v508 = vunpack.c.h.b16 %v493
      %v509 = vunpack.c.l.b16 %v494
      %v510 = vunpack.c.h.b16 %v494
      %v511 = vunpack.c.l.b16 %v495
      %v512 = vunpack.c.h.b16 %v495
      %v513 = vunpack.c.l.b16 %v496
      %v514 = vunpack.c.h.b16 %v496
      %v515 = vunpack.c.l.b16 %v497
      %v516 = vunpack.c.h.b16 %v497
      %v517 = vunpack.c.l.b16 %v498
      %v518 = vunpack.c.h.b16 %v498
      %v519 = vunpack.c.l.b16 %v499
      %v520 = vunpack.c.h.b16 %v499
      %v521 = vpack.c.b16 %v507, %v507
      %v522 = vpack.c.b16 %v508, %v508
      %v523 = vpack.c.b16 %v509, %v509
      %v524 = vpack.c.b16 %v510, %v510
      %v525 = vpack.c.b16 %v511, %v511
      %v526 = vpack.c.b16 %v512, %v512
      %v527 = vpack.c.b16 %v513, %v513
      %v528 = vpack.c.b16 %v514, %v514
      %v529 = vpack.c.b16 %v515, %v515
      %v530 = vpack.c.b16 %v516, %v516
      %v531 = vpack.c.b16 %v517, %v517
      %v532 = vpack.c.b16 %v518, %v518
      %v533 = vpack.c.b16 %v519, %v519
      %v534 = vpack.c.b16 %v520, %v520
      %549 = vst [vmem:[%s315] sm:$0xf] %v521
      %550 = vst [vmem:[%s315 + $0x4] sm:$0xf] %v522
      %551 = vst [vmem:[%s315 + $0x8] sm:$0xf] %v523
      %552 = vst [vmem:[%s315 + $0xc] sm:$0xf] %v524
      %553 = vst [vmem:[%s315 + $0x10] sm:$0xf] %v525
      %554 = vst [vmem:[%s315 + $0x14] sm:$0xf] %v526
      %555 = vst [vmem:[%s315 + $0x18] sm:$0xf] %v527
      %556 = vst [vmem:[%s315 + $0x1c] sm:$0xf] %v528
      %557 = vst [vmem:[%s315 + $0x20] sm:$0xf] %v529
      %558 = vst [vmem:[%s315 + $0x24] sm:$0xf] %v530
      %559 = vst [vmem:[%s315 + $0x28] sm:$0xf] %v531
      %560 = vst [vmem:[%s315 + $0x2c] sm:$0xf] %v532
      %561 = vst [vmem:[%s315 + $0x30] sm:$0xf] %v533
      %562 = vst [vmem:[%s315 + $0x34] sm:$0xf] %v534
      %v563 = vld [vmem:[%s3] sm:$0xf]
      %v564 = vld [vmem:[%s3 + $0x4] sm:$0xf]
      %v565 = vld [vmem:[%s3 + $0x8] sm:$0xf]
      %v566 = vld [vmem:[%s3 + $0xc] sm:$0xf]
      %v567 = vld [vmem:[%s3 + $0x10] sm:$0xf]
      %v568 = vld [vmem:[%s3 + $0x14] sm:$0xf]
      %v569 = vld [vmem:[%s3 + $0x18] sm:$0xf]
      %v570 = vld [vmem:[%s3 + $0x1c] sm:$0xf]
      %v571 = vld [vmem:[%s3 + $0x20] sm:$0xf]
      %v572 = vld [vmem:[%s3 + $0x24] sm:$0xf]
      %v573 = vld [vmem:[%s3 + $0x28] sm:$0xf]
      %v574 = vld [vmem:[%s3 + $0x2c] sm:$0xf]
      %v575 = vld [vmem:[%s3 + $0x30] sm:$0xf]
      %v576 = vld [vmem:[%s3 + $0x34] sm:$0xf]
      %v577 = vld [vmem:[%s3 + $0x38] sm:$0xf]
      %v578 = vld [vmem:[%s3 + $0x3c] sm:$0xf]
      %v579 = vld [vmem:[%s4] sm:$0x1]
      %v581 = vlaneseq
      %v582 = vshrl.u32 %v581, 7
      %v583 = vsub.s32 0, %v582
      %v584 = vrot.slane %v579, %v583
      %v602 = vunpack.c.l.b16 %v563
      %v603 = vunpack.c.l.b16 %v564
      %v604 = vunpack.c.l.b16 %v565
      %v605 = vunpack.c.l.b16 %v566
      %v606 = vunpack.c.l.b16 %v567
      %v607 = vunpack.c.l.b16 %v568
      %v608 = vunpack.c.l.b16 %v569
      %v609 = vunpack.c.l.b16 %v570
      %v610 = vunpack.c.l.b16 %v571
      %v611 = vunpack.c.l.b16 %v572
      %v612 = vunpack.c.l.b16 %v573
      %v613 = vunpack.c.l.b16 %v574
      %v614 = vunpack.c.l.b16 %v575
      %v615 = vunpack.c.l.b16 %v576
      %v616 = vunpack.c.l.b16 %v577
      %v617 = vunpack.c.l.b16 %v578
      %v618 = vpack.c.b16 %v603, %v602
      %v619 = vpack.c.b16 %v605, %v604
      %v620 = vpack.c.b16 %v607, %v606
      %v621 = vpack.c.b16 %v609, %v608
      %v622 = vpack.c.b16 %v611, %v610
      %v623 = vpack.c.b16 %v613, %v612
      %v624 = vpack.c.b16 %v615, %v614
      %v625 = vpack.c.b16 %v617, %v616
      %634 = vmatprep.subr.bf16.mxu0 0
      %635 = vmatpush1.bf16.msra.mxu0 %v618
      %636 = vmatprep.subr.bf16.mxu0 0
      %637 = vmatpush1.bf16.msra.mxu0 %v619
      %638 = vmatprep.subr.bf16.mxu0 0
      %639 = vmatpush1.bf16.msra.mxu0 %v620
      %640 = vmatprep.subr.bf16.mxu0 0
      %641 = vmatpush1.bf16.msra.mxu0 %v621
      %642 = vmatprep.subr.bf16.mxu0 0
      %643 = vmatpush1.bf16.msra.mxu0 %v622
      %644 = vmatprep.subr.bf16.mxu0 0
      %645 = vmatpush1.bf16.msra.mxu0 %v623
      %646 = vmatprep.subr.bf16.mxu0 0
      %647 = vmatpush1.bf16.msra.mxu0 %v624
      %648 = vmatprep.subr.bf16.mxu0 0
      %649 = vmatpush1.bf16.msra.mxu0 %v625
      %650 = vmatprep.subr.bf16.mxu0 0
      %651 = vmatpush1.bf16.msra.mxu0 0
      %652 = vmatprep.subr.bf16.mxu0 0
      %653 = vmatpush1.bf16.msra.mxu0 0
      %654 = vmatprep.subr.bf16.mxu0 0
      %655 = vmatpush1.bf16.msra.mxu0 0
      %656 = vmatprep.subr.bf16.mxu0 0
      %657 = vmatpush1.bf16.msra.mxu0 0
      %658 = vmatprep.subr.bf16.mxu0 0
      %659 = vmatpush1.bf16.msra.mxu0 0
      %660 = vmatprep.subr.bf16.mxu0 0
      %661 = vmatpush1.bf16.msra.mxu0 0
      %662 = vmatprep.subr.bf16.mxu0 0
      %663 = vmatpush1.bf16.msra.mxu0 0
      %664 = vmatprep.subr.bf16.mxu0 0
      %665 = vmatpush1.bf16.msra.mxu0 0
      %666 = vmatprep.mubr.bf16.mxu0 0
      %667 = vmatmul.mubr.bf16.gmra.mrb[0].mxu0 %v493
      %v668 = vpop.f32.mrb[0].mxu0
      %v669 = vadd.f32 %v584, %v668
      %v670 = vpop.f32.mrb[0].mxu0
      %v671 = vpop.f32.mrb[0].mxu0
      %v672 = vadd.f32 %v584, %v671
      %v673 = vpop.f32.mrb[0].mxu0
      %674 = vmatprep.mubr.bf16.mxu0 0
      %675 = vmatmul.mubr.bf16.gmra.mrb[0].mxu0 %v494
      %v676 = vpop.f32.mrb[0].mxu0
      %v677 = vadd.f32 %v584, %v676
      %v678 = vpop.f32.mrb[0].mxu0
      %v679 = vpop.f32.mrb[0].mxu0
      %v680 = vadd.f32 %v584, %v679
      %v681 = vpop.f32.mrb[0].mxu0
      %682 = vmatprep.mubr.bf16.mxu0 0
      %683 = vmatmul.mubr.bf16.gmra.mrb[0].mxu0 %v495
      %v684 = vpop.f32.mrb[0].mxu0
      %v685 = vadd.f32 %v584, %v684
      %v686 = vpop.f32.mrb[0].mxu0
      %v687 = vpop.f32.mrb[0].mxu0
      %v688 = vadd.f32 %v584, %v687
      %v689 = vpop.f32.mrb[0].mxu0
      %690 = vmatprep.mubr.bf16.mxu0 0
      %691 = vmatmul.mubr.bf16.gmra.mrb[0].mxu0 %v496
      %v692 = vpop.f32.mrb[0].mxu0
      %v693 = vadd.f32 %v584, %v692
      %v694 = vpop.f32.mrb[0].mxu0
      %v695 = vpop.f32.mrb[0].mxu0
      %v696 = vadd.f32 %v584, %v695
      %v697 = vpop.f32.mrb[0].mxu0
      %698 = vmatprep.mubr.bf16.mxu0 0
      %699 = vmatmul.mubr.bf16.gmra.mrb[0].mxu0 %v497
      %v700 = vpop.f32.mrb[0].mxu0
      %v701 = vadd.f32 %v584, %v700
      %v702 = vpop.f32.mrb[0].mxu0
      %v703 = vpop.f32.mrb[0].mxu0
      %v704 = vadd.f32 %v584, %v703
      %v705 = vpop.f32.mrb[0].mxu0
      %706 = vmatprep.mubr.bf16.mxu0 0
      %707 = vmatmul.mubr.bf16.gmra.mrb[0].mxu0 %v498
      %v708 = vpop.f32.mrb[0].mxu0
      %v709 = vadd.f32 %v584, %v708
      %v710 = vpop.f32.mrb[0].mxu0
      %v711 = vpop.f32.mrb[0].mxu0
      %v712 = vadd.f32 %v584, %v711
      %v713 = vpop.f32.mrb[0].mxu0
      %714 = vmatprep.mubr.bf16.mxu0 0
      %715 = vmatmul.mubr.bf16.gmra.mrb[0].mxu0 %v499
      %v716 = vpop.f32.mrb[0].mxu0
      %v717 = vadd.f32 %v584, %v716
      %v718 = vpop.f32.mrb[0].mxu0
      %v719 = vpop.f32.mrb[0].mxu0
      %v720 = vadd.f32 %v584, %v719
      %v721 = vpop.f32.mrb[0].mxu0
      %722 = vdwg.mxu0
      %v723 = vmax.f32 %v669, 0.0
      %v724 = vmax.f32 %v672, 0.0
      %v725 = vmax.f32 %v677, 0.0
      %v726 = vmax.f32 %v680, 0.0
      %v727 = vmax.f32 %v685, 0.0
      %v728 = vmax.f32 %v688, 0.0
      %v729 = vmax.f32 %v693, 0.0
      %v730 = vmax.f32 %v696, 0.0
      %v731 = vmax.f32 %v701, 0.0
      %v732 = vmax.f32 %v704, 0.0
      %v733 = vmax.f32 %v709, 0.0
      %v734 = vmax.f32 %v712, 0.0
      %v735 = vmax.f32 %v717, 0.0
      %v736 = vmax.f32 %v720, 0.0
      %v737 = vpack.c.bf16 %v724, %v723
      %v738 = vpack.c.bf16 %v726, %v725
      %v739 = vpack.c.bf16 %v728, %v727
      %v740 = vpack.c.bf16 %v730, %v729
      %v741 = vpack.c.bf16 %v732, %v731
      %v742 = vpack.c.bf16 %v734, %v733
      %v743 = vpack.c.bf16 %v736, %v735
      %v744 = vld [vmem:[%s5] sm:$0xf]
      %v745 = vld [vmem:[%s5 + $0x4] sm:$0xf]
      %v746 = vld [vmem:[%s5 + $0x8] sm:$0xf]
      %v747 = vld [vmem:[%s5 + $0xc] sm:$0xf]
      %v748 = vld [vmem:[%s5 + $0x10] sm:$0xf]
      %v749 = vld [vmem:[%s5 + $0x14] sm:$0xf]
      %v750 = vld [vmem:[%s5 + $0x18] sm:$0xf]
      %v751 = vld [vmem:[%s5 + $0x1c] sm:$0xf]
      %v752 = vld [vmem:[%s5 + $0x20] sm:$0xf]
      %v753 = vld [vmem:[%s5 + $0x24] sm:$0xf]
      %v754 = vld [vmem:[%s5 + $0x28] sm:$0xf]
      %v755 = vld [vmem:[%s5 + $0x2c] sm:$0xf]
      %v756 = vld [vmem:[%s5 + $0x30] sm:$0xf]
      %v757 = vld [vmem:[%s5 + $0x34] sm:$0xf]
      %v758 = vld [vmem:[%s5 + $0x38] sm:$0xf]
      %v759 = vld [vmem:[%s5 + $0x3c] sm:$0xf]
      %v760 = vld [vmem:[%s6] sm:$0x1]
      %v762 = vlaneseq
      %v763 = vshrl.u32 %v762, 7
      %v764 = vsub.s32 0, %v763
      %v765 = vrot.slane %v760, %v764
      %v783 = vunpack.c.l.b16 %v744
      %v784 = vunpack.c.l.b16 %v745
      %v785 = vunpack.c.l.b16 %v746
      %v786 = vunpack.c.l.b16 %v747
      %v787 = vunpack.c.l.b16 %v748
      %v788 = vunpack.c.l.b16 %v749
      %v789 = vunpack.c.l.b16 %v750
      %v790 = vunpack.c.l.b16 %v751
      %v791 = vunpack.c.l.b16 %v752
      %v792 = vunpack.c.l.b16 %v753
      %v793 = vunpack.c.l.b16 %v754
      %v794 = vunpack.c.l.b16 %v755
      %v795 = vunpack.c.l.b16 %v756
      %v796 = vunpack.c.l.b16 %v757
      %v797 = vunpack.c.l.b16 %v758
      %v798 = vunpack.c.l.b16 %v759
      %v799 = vpack.c.b16 %v784, %v783
      %v800 = vpack.c.b16 %v786, %v785
      %v801 = vpack.c.b16 %v788, %v787
      %v802 = vpack.c.b16 %v790, %v789
      %v803 = vpack.c.b16 %v792, %v791
      %v804 = vpack.c.b16 %v794, %v793
      %v805 = vpack.c.b16 %v796, %v795
      %v806 = vpack.c.b16 %v798, %v797
      %815 = vmatprep.subr.bf16.mxu0 0
      %816 = vmatpush1.bf16.msra.mxu0 %v799
      %817 = vmatprep.subr.bf16.mxu0 0
      %818 = vmatpush1.bf16.msra.mxu0 %v800
      %819 = vmatprep.subr.bf16.mxu0 0
      %820 = vmatpush1.bf16.msra.mxu0 %v801
      %821 = vmatprep.subr.bf16.mxu0 0
      %822 = vmatpush1.bf16.msra.mxu0 %v802
      %823 = vmatprep.subr.bf16.mxu0 0
      %824 = vmatpush1.bf16.msra.mxu0 %v803
      %825 = vmatprep.subr.bf16.mxu0 0
      %826 = vmatpush1.bf16.msra.mxu0 %v804
      %827 = vmatprep.subr.bf16.mxu0 0
      %828 = vmatpush1.bf16.msra.mxu0 %v805
      %829 = vmatprep.subr.bf16.mxu0 0
      %830 = vmatpush1.bf16.msra.mxu0 %v806
      %831 = vmatprep.subr.bf16.mxu0 0
      %832 = vmatpush1.bf16.msra.mxu0 0
      %833 = vmatprep.subr.bf16.mxu0 0
      %834 = vmatpush1.bf16.msra.mxu0 0
      %835 = vmatprep.subr.bf16.mxu0 0
      %836 = vmatpush1.bf16.msra.mxu0 0
      %837 = vmatprep.subr.bf16.mxu0 0
      %838 = vmatpush1.bf16.msra.mxu0 0
      %839 = vmatprep.subr.bf16.mxu0 0
      %840 = vmatpush1.bf16.msra.mxu0 0
      %841 = vmatprep.subr.bf16.mxu0 0
      %842 = vmatpush1.bf16.msra.mxu0 0
      %843 = vmatprep.subr.bf16.mxu0 0
      %844 = vmatpush1.bf16.msra.mxu0 0
      %845 = vmatprep.subr.bf16.mxu0 0
      %846 = vmatpush1.bf16.msra.mxu0 0
      %847 = vmatprep.mubr.bf16.mxu0 0
      %848 = vmatmul.mubr.bf16.gmra.mrb[0].mxu0 %v737
      %v849 = vpop.f32.mrb[0].mxu0
      %v850 = vadd.f32 %v765, %v849
      %v851 = vpop.f32.mrb[0].mxu0
      %v852 = vpop.f32.mrb[0].mxu0
      %v853 = vadd.f32 %v765, %v852
      %v854 = vpop.f32.mrb[0].mxu0
      %855 = vmatprep.mubr.bf16.mxu0 0
      %856 = vmatmul.mubr.bf16.gmra.mrb[0].mxu0 %v738
      %v857 = vpop.f32.mrb[0].mxu0
      %v858 = vadd.f32 %v765, %v857
      %v859 = vpop.f32.mrb[0].mxu0
      %v860 = vpop.f32.mrb[0].mxu0
      %v861 = vadd.f32 %v765, %v860
      %v862 = vpop.f32.mrb[0].mxu0
      %863 = vmatprep.mubr.bf16.mxu0 0
      %864 = vmatmul.mubr.bf16.gmra.mrb[0].mxu0 %v739
      %v865 = vpop.f32.mrb[0].mxu0
      %v866 = vadd.f32 %v765, %v865
      %v867 = vpop.f32.mrb[0].mxu0
      %v868 = vpop.f32.mrb[0].mxu0
      %v869 = vadd.f32 %v765, %v868
      %v870 = vpop.f32.mrb[0].mxu0
      %871 = vmatprep.mubr.bf16.mxu0 0
      %872 = vmatmul.mubr.bf16.gmra.mrb[0].mxu0 %v740
      %v873 = vpop.f32.mrb[0].mxu0
      %v874 = vadd.f32 %v765, %v873
      %v875 = vpop.f32.mrb[0].mxu0
      %v876 = vpop.f32.mrb[0].mxu0
      %v877 = vadd.f32 %v765, %v876
      %v878 = vpop.f32.mrb[0].mxu0
      %879 = vmatprep.mubr.bf16.mxu0 0
      %880 = vmatmul.mubr.bf16.gmra.mrb[0].mxu0 %v741
      %v881 = vpop.f32.mrb[0].mxu0
      %v882 = vadd.f32 %v765, %v881
      %v883 = vpop.f32.mrb[0].mxu0
      %v884 = vpop.f32.mrb[0].mxu0
      %v885 = vadd.f32 %v765, %v884
      %v886 = vpop.f32.mrb[0].mxu0
      %887 = vmatprep.mubr.bf16.mxu0 0
      %888 = vmatmul.mubr.bf16.gmra.mrb[0].mxu0 %v742
      %v889 = vpop.f32.mrb[0].mxu0
      %v890 = vadd.f32 %v765, %v889
      %v891 = vpop.f32.mrb[0].mxu0
      %v892 = vpop.f32.mrb[0].mxu0
      %v893 = vadd.f32 %v765, %v892
      %v894 = vpop.f32.mrb[0].mxu0
      %895 = vmatprep.mubr.bf16.mxu0 0
      %896 = vmatmul.mubr.bf16.gmra.mrb[0].mxu0 %v743
      %v897 = vpop.f32.mrb[0].mxu0
      %v898 = vadd.f32 %v765, %v897
      %v899 = vpop.f32.mrb[0].mxu0
      %v900 = vpop.f32.mrb[0].mxu0
      %v901 = vadd.f32 %v765, %v900
      %v902 = vpop.f32.mrb[0].mxu0
      %903 = vdwg.mxu0
      %v904 = vpack.c.bf16 %v853, %v850
      %v905 = vpack.c.bf16 %v861, %v858
      %v906 = vpack.c.bf16 %v869, %v866
      %v907 = vpack.c.bf16 %v877, %v874
      %v908 = vpack.c.bf16 %v885, %v882
      %v909 = vpack.c.bf16 %v893, %v890
      %v910 = vpack.c.bf16 %v901, %v898
      %v918 = vunpack.c.l.b16 %v904
      %v919 = vunpack.c.h.b16 %v904
      %v920 = vunpack.c.l.b16 %v905
      %v921 = vunpack.c.h.b16 %v905
      %v922 = vunpack.c.l.b16 %v906
      %v923 = vunpack.c.h.b16 %v906
      %v924 = vunpack.c.l.b16 %v907
      %v925 = vunpack.c.h.b16 %v907
      %v926 = vunpack.c.l.b16 %v908
      %v927 = vunpack.c.h.b16 %v908
      %v928 = vunpack.c.l.b16 %v909
      %v929 = vunpack.c.h.b16 %v909
      %v930 = vunpack.c.l.b16 %v910
      %v931 = vunpack.c.h.b16 %v910
      %v932 = vpack.c.b16 %v918, %v918
      %v933 = vpack.c.b16 %v919, %v919
      %v934 = vpack.c.b16 %v920, %v920
      %v935 = vpack.c.b16 %v921, %v921
      %v936 = vpack.c.b16 %v922, %v922
      %v937 = vpack.c.b16 %v923, %v923
      %v938 = vpack.c.b16 %v924, %v924
      %v939 = vpack.c.b16 %v925, %v925
      %v940 = vpack.c.b16 %v926, %v926
      %v941 = vpack.c.b16 %v927, %v927
      %v942 = vpack.c.b16 %v928, %v928
      %v943 = vpack.c.b16 %v929, %v929
      %v944 = vpack.c.b16 %v930, %v930
      %v945 = vpack.c.b16 %v931, %v931
      %960 = vst [vmem:[%s321] sm:$0xf] %v932
      %961 = vst [vmem:[%s321 + $0x4] sm:$0xf] %v933
      %962 = vst [vmem:[%s321 + $0x8] sm:$0xf] %v934
      %963 = vst [vmem:[%s321 + $0xc] sm:$0xf] %v935
      %964 = vst [vmem:[%s321 + $0x10] sm:$0xf] %v936
      %965 = vst [vmem:[%s321 + $0x14] sm:$0xf] %v937
      %966 = vst [vmem:[%s321 + $0x18] sm:$0xf] %v938
      %967 = vst [vmem:[%s321 + $0x1c] sm:$0xf] %v939
      %968 = vst [vmem:[%s321 + $0x20] sm:$0xf] %v940
      %969 = vst [vmem:[%s321 + $0x24] sm:$0xf] %v941
      %970 = vst [vmem:[%s321 + $0x28] sm:$0xf] %v942
      %971 = vst [vmem:[%s321 + $0x2c] sm:$0xf] %v943
      %972 = vst [vmem:[%s321 + $0x30] sm:$0xf] %v944
      %973 = vst [vmem:[%s321 + $0x34] sm:$0xf] %v945
      %s974 = smul.u32 14, %s20
      %p975 = scmp.lt.s32.totalorder %s974, 27
      %s976 = scalar_select %p975, %s974, 27
      %s977 = smul.addr %s976, 4
      %s978 = scalar_lea.vmem %s7, %s977
      %s979 = smul.u32 14, %s20
      %p980 = scmp.lt.s32.totalorder %s979, 27
      %s981 = scalar_select %p980, %s979, 27
      %s982 = smul.addr %s981, 4
      %s983 = scalar_lea.vmem %s8, %s982
      // Predicated region
      $region49: #{basic_qnetwork_forward.1} parent=47 // pred_check
        %p984 = pneg %p190
      $region50: #{basic_qnetwork_forward.1} parent=47 // pred_check_branch
        %986 = sbr.rel (%p984) target = $region52
      $region51: #{basic_qnetwork_forward.1} parent=47 // pred_region
        %s987 = smul.u32 14, %s20
      $region52: #{basic_qnetwork_forward.1} parent=47 // pred_fallthru
        _
      // Predicated region
      $region53: #{basic_qnetwork_forward.1} parent=47 // pred_check
        %p988 = pneg %p216
      $region54: #{basic_qnetwork_forward.1} parent=47 // pred_check_branch
        %990 = sbr.rel (%p988) target = $region56
      $region55: #{basic_qnetwork_forward.1} parent=47 // pred_region
        %s991 = smul.u32 14, %s20
      $region56: #{basic_qnetwork_forward.1} parent=47 // pred_fallthru
        _
    $region48: #{basic_qnetwork_forward.1} parent=5 // pred_fallthru
      _
    %p992 = scmp.le.s32.totalorder 2, %s15
    // Predicated region
    $region57: #{basic_qnetwork_forward.1} parent=5 // pred_check
      %p993 = pneg %p992
    $region58: #{basic_qnetwork_forward.1} parent=5 // pred_check_branch
      %995 = sbr.rel (%p993) target = $region60
    $region59: #{basic_qnetwork_forward.1} parent=5 // pred_region
      %s996 = ssub.s32 %s15, 2
      // Predicated region
      $region61: #{basic_qnetwork_forward.1} parent=59 // pred_check
        %p997 = pneg %p196
      $region62: #{basic_qnetwork_forward.1} parent=59 // pred_check_branch
        %999 = sbr.rel (%p997) target = $region64
      $region63: #{basic_qnetwork_forward.1} parent=59 // pred_region
        %s1000 = smul.u32 14, %s21
        %p1001 = scmp.lt.s32.totalorder %s1000, 27
        %s1002 = scalar_select %p1001, %s1000, 27
        %s1003 = smul.addr %s1002, 4
        %s1004 = scalar_lea.vmem %s7, %s1003
      $region64: #{basic_qnetwork_forward.1} parent=59 // pred_fallthru
        _
      // Predicated region
      $region65: #{basic_qnetwork_forward.1} parent=59 // pred_check
        %p1005 = pneg %p222
      $region66: #{basic_qnetwork_forward.1} parent=59 // pred_check_branch
        %1007 = sbr.rel (%p1005) target = $region68
      $region67: #{basic_qnetwork_forward.1} parent=59 // pred_region
        %s1008 = smul.u32 14, %s21
        %p1009 = scmp.lt.s32.totalorder %s1008, 27
        %s1010 = scalar_select %p1009, %s1008, 27
        %s1011 = smul.addr %s1010, 4
        %s1012 = scalar_lea.vmem %s8, %s1011
      $region68: #{basic_qnetwork_forward.1} parent=59 // pred_fallthru
        _
    $region60: #{basic_qnetwork_forward.1} parent=5 // pred_fallthru
      _
  $region6: #{basic_qnetwork_forward.1} parent=0 // loop_footer
    %s19 = sadd.s32 1, %s15
  $region7: #{basic_qnetwork_forward.1} parent=0 // loop_footer_branch
    %14 = sbr.rel target = $region3
  $region8: #{basic_qnetwork_forward.1} parent=0 // loop_exit
    _

</llo_original>
